<compile_context>
chip_gen: v7x
topology: tpu7x:2x2x1
jax: 0.10.0
libtpu: 0.0.40
codegen_flags: <defaults>
</compile_context>

<pallas_src>
import functools

import jax
import jax.numpy as jnp
from jax import lax
from jax.experimental import pallas as pl
from jax.experimental.pallas import tpu as pltpu


def _pq_kernel(x_ref, gum_ref, w_ref, b_ref, cv_ref, logits_ref, q_ref, *,
               n_groups, n_entries):
    """Fused proj -> gumbel-softmax(hard) -> block-diagonal codebook matmul.

    x_ref:      (C, Tt)     bf16 input tile (original NCT layout, B squeezed)
    gum_ref:    (Tt, GE)    f32 Gumbel(0,1) noise tile
    w_ref:      (C, GE)     bf16 proj weight (pre-transposed)
    b_ref:      (1, GE)     f32 proj bias
    cv_ref:     (GE, Gv)    f32 block-diagonal codebook
    logits_ref: (Tt, GE)    f32 codebook logits output
    q_ref:      (Tt, Gv)    f32 quantized output
    """
    # --- projection (MXU): contract over C = dim 0 of both operands.  This
    # folds the module's x.transpose(-2, -1) into the matmul instead of a
    # separate HBM pass / explicit in-kernel transpose.
    logits = lax.dot_general(
        x_ref[...], w_ref[...],
        dimension_numbers=(((0,), (0,)), ((), ())),
        preferred_element_type=jnp.float32,
    ) + b_ref[...]                                        # (Tt, GE) f32
    logits_ref[...] = logits.astype(logits_ref.dtype)

    # --- hard Gumbel-softmax forward value: per-group argmax of
    # (logits + gumbel).  The /temperature of the reference is dropped since
    # argmax is invariant to a positive scale and only the hard one-hot value
    # reaches the output.
    y = logits + gum_ref[...]
    rows = y.shape[0]

    one_hots = []
    for g in range(n_groups):
        y_g = y[:, g * n_entries:(g + 1) * n_entries]             # (Tt, E)
        ent = lax.broadcasted_iota(jnp.int32, (rows, n_entries), 1)
        m_g = jnp.max(y_g, axis=-1, keepdims=True)                # (Tt, 1)
        # first index attaining the max (torch.argmax tie-break)
        idx = jnp.min(jnp.where(y_g == m_g, ent, n_entries),
                      axis=-1, keepdims=True)                     # (Tt, 1)
        one_hots.append((ent == idx).astype(jnp.float32))         # (Tt, E)
    one_hot = jnp.concatenate(one_hots, axis=-1)                  # (Tt, GE)

    # single matmul against the block-diagonal codebook -> one full-width store
    q_ref[...] = jnp.dot(one_hot, cv_ref[...],
                         preferred_element_type=jnp.float32).astype(q_ref.dtype)


def product_quantizer_forward(x, proj_w, proj_b, codevectors, seed, *,
                              n_groups, n_entries, temperature=1.0,
                              tile_t=512):
    """x: (B, z_dim, T) float32 — same call convention as the PyTorch module.

    Returns {'codebook_logits': (B, T, G, E), 'q': (B, T, q_dim)}.
    `temperature` only scales the soft path of gumbel_softmax; the hard
    forward value is scale-invariant, so it is accepted but unused here.
    """
    del temperature
    B, C, T = x.shape
    E = n_entries
    GE = n_groups * E
    v_dim = codevectors.shape[-1]
    q_dim = n_groups * v_dim

    # Tile over T.  Keep tiles a multiple of 128 rows when T allows it:
    # ~512-1024 rows fits comfortably in v7x's 64 MiB VMEM; on v5e/v6e this
    # can be pushed to 2048-4096 together with a larger vmem_limit_bytes.
    tile_t = min(tile_t, T)
    grid = (B, pl.cdiv(T, tile_t))

    # bf16 inputs for the MXU (in a real model x would already be bf16);
    # elementwise / Gumbel math stays f32 (v5e has no bf16 VPU/EUP).
    x_bf = jnp.asarray(x, jnp.bfloat16)                       # (B, C, T)
    w_t = jnp.asarray(proj_w, jnp.bfloat16).T                 # (C, GE)
    b2 = jnp.asarray(proj_b, jnp.float32).reshape(1, GE)

    # Block-diagonal codebook (GE, q_dim): group g's E codevectors occupy
    # rows [g*E, (g+1)*E) and columns [g*v_dim, (g+1)*v_dim).
    cv = jnp.asarray(codevectors, jnp.float32).reshape(n_groups, E, v_dim)
    cv_bd = jnp.zeros((GE, q_dim), jnp.float32)
    for g in range(n_groups):
        cv_bd = cv_bd.at[g * E:(g + 1) * E,
                         g * v_dim:(g + 1) * v_dim].set(cv[g])

    # Gumbel(0,1) noise, one draw per (b, t, group*E + entry), as in
    # F.gumbel_softmax.  Generated per element so every tile gets independent
    # noise (no per-tile seed reuse).
    gum = jax.random.gumbel(jax.random.PRNGKey(seed), (B, T, GE),
                            dtype=jnp.float32)

    kernel = functools.partial(_pq_kernel, n_groups=n_groups,
                               n_entries=n_entries)

    flops = 2 * B * T * C * GE + 2 * B * T * GE * q_dim
    bytes_accessed = (x_bf.size * 2 + gum.size * 4 + w_t.size * 2
                      + b2.size * 4 + cv_bd.size * 4
                      + B * T * GE * 4 + B * T * q_dim * 4)

    logits, q = pl.pallas_call(
        kernel,
        out_shape=(
            jax.ShapeDtypeStruct((B, T, GE), jnp.float32),
            jax.ShapeDtypeStruct((B, T, q_dim), jnp.float32),
        ),
        grid=grid,
        in_specs=[
            pl.BlockSpec((None, C, tile_t), lambda b, t: (b, 0, t)),   # x (NCT)
            pl.BlockSpec((None, tile_t, GE), lambda b, t: (b, t, 0)),  # gumbel
            pl.BlockSpec((C, GE), lambda b, t: (0, 0)),                # W^T
            pl.BlockSpec((1, GE), lambda b, t: (0, 0)),                # bias
            pl.BlockSpec((GE, q_dim), lambda b, t: (0, 0)),            # codebook
        ],
        out_specs=(
            pl.BlockSpec((None, tile_t, GE), lambda b, t: (b, t, 0)),
            pl.BlockSpec((None, tile_t, q_dim), lambda b, t: (b, t, 0)),
        ),
        compiler_params=pltpu.CompilerParams(
            dimension_semantics=("parallel", "parallel")),
        cost_estimate=pl.CostEstimate(flops=flops, transcendentals=0,
                                      bytes_accessed=bytes_accessed),
    )(x_bf, gum, w_t, b2, cv_bd)

    return {
        "codebook_logits": logits.reshape(B, T, n_groups, n_entries),
        "q": q,
    }


if __name__ == "__main__":
    # Small shapes consistent with the module.
    B, T = 2, 8
    z_dim = 32
    n_groups = 2
    n_entries = 16
    q_dim = 64                      # v_dim = 32
    v_dim = q_dim // n_groups
    temperature = 1.0
    seed = 1234

    key = jax.random.PRNGKey(0)
    k_x, k_w, k_b, k_cv = jax.random.split(key, 4)

    x = jax.random.normal(k_x, (B, z_dim, T), dtype=jnp.float32)
    proj_w = jax.random.normal(k_w, (n_groups * n_entries, z_dim),
                               dtype=jnp.float32) * 0.1      # (out, in) like nn.Linear
    proj_b = jax.random.normal(k_b, (n_groups * n_entries,),
                               dtype=jnp.float32) * 0.01
    codevectors = jax.random.normal(
        k_cv, (1, n_groups * n_entries, v_dim), dtype=jnp.float32)

    out = product_quantizer_forward(
        x, proj_w, proj_b, codevectors, seed=seed,
        n_groups=n_groups, n_entries=n_entries, temperature=temperature)
    jax.block_until_ready(out)

    GE = n_groups * n_entries
    assert out["codebook_logits"].shape == (B, T, n_groups, n_entries)
    assert out["q"].shape == (B, T, q_dim)

    # logits vs f32 reference (kernel matmul uses bf16 inputs -> loose tol)
    ref_logits = jnp.einsum("bct,oc->bto", x, proj_w) + proj_b
    assert bool(jnp.allclose(out["codebook_logits"].reshape(B, T, GE),
                             ref_logits, atol=1e-1, rtol=5e-2))

    # selection consistency: recompute the per-group argmax from the kernel's
    # own logits plus the identical Gumbel noise (same seed) and check q picks
    # exactly those codevectors.
    gum = jax.random.gumbel(jax.random.PRNGKey(seed), (B, T, GE),
                            dtype=jnp.float32)
    y = (out["codebook_logits"].reshape(B * T, n_groups, n_entries)
         + gum.reshape(B * T, n_groups, n_entries))
    idx = jnp.argmax(y, axis=-1)                              # (BT, G)
    cv = codevectors.reshape(n_groups, n_entries, v_dim)
    q_ref = jnp.stack([cv[g][idx[:, g]] for g in range(n_groups)], axis=1)
    assert bool(jnp.allclose(out["q"].reshape(B * T, n_groups, v_dim),
                             q_ref, atol=1e-6))

    print("KERNEL_OK")
</pallas_src>

<mosaic_0001>
module attributes {stable_mosaic.version = 11 : i64} {
  func.func @_pq_kernel(%arg0: i32, %arg1: i32, %arg2: memref<1x32x8xbf16, #tpu.memory_space<vmem>>, %arg3: memref<1x8x32xf32, #tpu.memory_space<vmem>>, %arg4: memref<32x32xbf16, #tpu.memory_space<vmem>>, %arg5: memref<1x32xf32, #tpu.memory_space<vmem>>, %arg6: memref<32x64xf32, #tpu.memory_space<vmem>>, %arg7: memref<1x8x32xf32, #tpu.memory_space<vmem>>, %arg8: memref<1x8x64xf32, #tpu.memory_space<vmem>>) attributes {dimension_semantics = [#tpu.dimension_semantics<parallel>, #tpu.dimension_semantics<parallel>], iteration_bounds = array<i64: 2, 1>, scalar_prefetch = 0 : i64, scratch_operands = 0 : i64, tpu.core_type = #tpu.core_type<tc>, window_params = [{transform_indices = @transform_0, window_bounds = array<i64: 1, 32, 8>}, {transform_indices = @transform_1, window_bounds = array<i64: 1, 8, 32>}, {pipeline_mode = #tpu.pipeline_mode<synchronous>, transform_indices = @transform_2, window_bounds = array<i64: 32, 32>}, {pipeline_mode = #tpu.pipeline_mode<synchronous>, transform_indices = @transform_3, window_bounds = array<i64: 1, 32>}, {pipeline_mode = #tpu.pipeline_mode<synchronous>, transform_indices = @transform_4, window_bounds = array<i64: 32, 64>}, {transform_indices = @transform_5, window_bounds = array<i64: 1, 8, 32>}, {transform_indices = @transform_6, window_bounds = array<i64: 1, 8, 64>}]} {
    %c0 = arith.constant 0 : index
    %c0_0 = arith.constant 0 : index
    %c0_1 = arith.constant 0 : index
    %0 = vector.load %arg2[%c0, %c0_0, %c0_1] : memref<1x32x8xbf16, #tpu.memory_space<vmem>>, vector<1x32x8xbf16>
    %1 = vector.shape_cast %0 : vector<1x32x8xbf16> to vector<32x8xbf16>
    %c0_2 = arith.constant 0 : index
    %c0_3 = arith.constant 0 : index
    %2 = vector.load %arg4[%c0_2, %c0_3] : memref<32x32xbf16, #tpu.memory_space<vmem>>, vector<32x32xbf16>
    %cst = arith.constant dense<0.000000e+00> : vector<8x32xf32>
    %3 = tpu.matmul %1, %2, %cst {dimension_numbers = #tpu.dot_dimension_numbers<[0], [0], [1], [1], [0, 1, 1, 1], [], []>} : vector<32x8xbf16>, vector<32x32xbf16>, vector<8x32xf32> -> vector<8x32xf32>
    %c0_4 = arith.constant 0 : index
    %c0_5 = arith.constant 0 : index
    %4 = vector.load %arg5[%c0_4, %c0_5] : memref<1x32xf32, #tpu.memory_space<vmem>>, vector<1x32xf32>
    %5 = vector.broadcast %4 : vector<1x32xf32> to vector<8x32xf32>
    %6 = arith.addf %3, %5 : vector<8x32xf32>
    %c0_6 = arith.constant 0 : index
    %c0_7 = arith.constant 0 : index
    %c0_8 = arith.constant 0 : index
    %7 = vector.load %arg7[%c0_6, %c0_7, %c0_8] : memref<1x8x32xf32, #tpu.memory_space<vmem>>, vector<1x8x32xf32>
    %8 = vector.shape_cast %7 : vector<1x8x32xf32> to vector<8x32xf32>
    %9 = vector.shape_cast %6 : vector<8x32xf32> to vector<1x8x32xf32>
    tpu.vector_store %arg7[%c0_6, %c0_7, %c0_8], %9 {strides = array<i32>} : memref<1x8x32xf32, #tpu.memory_space<vmem>>, vector<1x8x32xf32>,
    %c0_9 = arith.constant 0 : index
    %c0_10 = arith.constant 0 : index
    %c0_11 = arith.constant 0 : index
    %10 = vector.load %arg3[%c0_9, %c0_10, %c0_11] : memref<1x8x32xf32, #tpu.memory_space<vmem>>, vector<1x8x32xf32>
    %11 = vector.shape_cast %10 : vector<1x8x32xf32> to vector<8x32xf32>
    %12 = arith.addf %6, %11 : vector<8x32xf32>
    %13 = vector.extract_strided_slice %12 {offsets = [0, 0], sizes = [8, 16], strides = [1, 1]} : vector<8x32xf32> to vector<8x16xf32>
    %14 = tpu.iota {dimensions = array<i32: 1>} : vector<8x16xi32>
    %cst_12 = arith.constant dense<0xFF800000> : vector<8xf32>
    %15 = vector.multi_reduction <maximumf>, %13, %cst_12 [1] : vector<8x16xf32> to vector<8xf32>
    %16 = vector.shape_cast %15 : vector<8xf32> to vector<8x1xf32>
    %17 = vector.broadcast %16 : vector<8x1xf32> to vector<8x16xf32>
    %18 = arith.cmpf oeq, %13, %17 : vector<8x16xf32>
    %c16_i32 = arith.constant 16 : i32
    %19 = vector.broadcast %c16_i32 : i32 to vector<8x16xi32>
    %20 = arith.select %18, %14, %19 : vector<8x16xi1>, vector<8x16xi32>
    %cst_13 = arith.constant dense<2147483647> : vector<8xi32>
    %21 = vector.multi_reduction <minsi>, %20, %cst_13 [1] : vector<8x16xi32> to vector<8xi32>
    %22 = vector.shape_cast %21 : vector<8xi32> to vector<8x1xi32>
    %23 = vector.broadcast %22 : vector<8x1xi32> to vector<8x16xi32>
    %24 = arith.cmpi eq, %14, %23 : vector<8x16xi32>
    %25 = arith.extui %24 : vector<8x16xi1> to vector<8x16xi32>
    %26 = arith.sitofp %25 : vector<8x16xi32> to vector<8x16xf32>
    %27 = vector.extract_strided_slice %12 {offsets = [0, 16], sizes = [8, 16], strides = [1, 1]} : vector<8x32xf32> to vector<8x16xf32>
    %28 = tpu.iota {dimensions = array<i32: 1>} : vector<8x16xi32>
    %cst_14 = arith.constant dense<0xFF800000> : vector<8xf32>
    %29 = vector.multi_reduction <maximumf>, %27, %cst_14 [1] : vector<8x16xf32> to vector<8xf32>
    %30 = vector.shape_cast %29 : vector<8xf32> to vector<8x1xf32>
    %31 = vector.broadcast %30 : vector<8x1xf32> to vector<8x16xf32>
    %32 = arith.cmpf oeq, %27, %31 : vector<8x16xf32>
    %c16_i32_15 = arith.constant 16 : i32
    %33 = vector.broadcast %c16_i32_15 : i32 to vector<8x16xi32>
    %34 = arith.select %32, %28, %33 : vector<8x16xi1>, vector<8x16xi32>
    %cst_16 = arith.constant dense<2147483647> : vector<8xi32>
    %35 = vector.multi_reduction <minsi>, %34, %cst_16 [1] : vector<8x16xi32> to vector<8xi32>
    %36 = vector.shape_cast %35 : vector<8xi32> to vector<8x1xi32>
    %37 = vector.broadcast %36 : vector<8x1xi32> to vector<8x16xi32>
    %38 = arith.cmpi eq, %28, %37 : vector<8x16xi32>
    %39 = arith.extui %38 : vector<8x16xi1> to vector<8x16xi32>
    %40 = arith.sitofp %39 : vector<8x16xi32> to vector<8x16xf32>
    %41 = tpu.concatenate %26, %40 in 1 : vector<8x16xf32>, vector<8x16xf32> -> vector<8x32xf32>
    %c0_17 = arith.constant 0 : index
    %c0_18 = arith.constant 0 : index
    %42 = vector.load %arg6[%c0_17, %c0_18] : memref<32x64xf32, #tpu.memory_space<vmem>>, vector<32x64xf32>
    %cst_19 = arith.constant dense<0.000000e+00> : vector<8x64xf32>
    %43 = tpu.matmul %41, %42, %cst_19 {dimension_numbers = #tpu.dot_dimension_numbers<[1], [0], [0], [1], [0, 0, 1, 1], [], []>} : vector<8x32xf32>, vector<32x64xf32>, vector<8x64xf32> -> vector<8x64xf32>
    %c0_20 = arith.constant 0 : index
    %c0_21 = arith.constant 0 : index
    %c0_22 = arith.constant 0 : index
    %44 = vector.load %arg8[%c0_20, %c0_21, %c0_22] : memref<1x8x64xf32, #tpu.memory_space<vmem>>, vector<1x8x64xf32>
    %45 = vector.shape_cast %44 : vector<1x8x64xf32> to vector<8x64xf32>
    %46 = vector.shape_cast %43 : vector<8x64xf32> to vector<1x8x64xf32>
    tpu.vector_store %arg8[%c0_20, %c0_21, %c0_22], %46 {strides = array<i32>} : memref<1x8x64xf32, #tpu.memory_space<vmem>>, vector<1x8x64xf32>,
    return
  }
  func.func @transform_0(%arg0: i32, %arg1: i32) -> (i32, i32, i32) {
    %c0_i32 = arith.constant 0 : i32
    %c0_i32_0 = arith.constant 0 : i32
    return %arg0, %c0_i32, %arg1 : i32, i32, i32
  }
  func.func @transform_1(%arg0: i32, %arg1: i32) -> (i32, i32, i32) {
    %c0_i32 = arith.constant 0 : i32
    %c0_i32_0 = arith.constant 0 : i32
    return %arg0, %arg1, %c0_i32 : i32, i32, i32
  }
  func.func @transform_2(%arg0: i32, %arg1: i32) -> (i32, i32) {
    %c0_i32 = arith.constant 0 : i32
    %c0_i32_0 = arith.constant 0 : i32
    %c0_i32_1 = arith.constant 0 : i32
    return %c0_i32, %c0_i32_0 : i32, i32
  }
  func.func @transform_3(%arg0: i32, %arg1: i32) -> (i32, i32) {
    %c0_i32 = arith.constant 0 : i32
    %c0_i32_0 = arith.constant 0 : i32
    %c0_i32_1 = arith.constant 0 : i32
    return %c0_i32, %c0_i32_0 : i32, i32
  }
  func.func @transform_4(%arg0: i32, %arg1: i32) -> (i32, i32) {
    %c0_i32 = arith.constant 0 : i32
    %c0_i32_0 = arith.constant 0 : i32
    %c0_i32_1 = arith.constant 0 : i32
    return %c0_i32, %c0_i32_0 : i32, i32
  }
  func.func @transform_5(%arg0: i32, %arg1: i32) -> (i32, i32, i32) {
    %c0_i32 = arith.constant 0 : i32
    %c0_i32_0 = arith.constant 0 : i32
    return %arg0, %arg1, %c0_i32 : i32, i32, i32
  }
  func.func @transform_6(%arg0: i32, %arg1: i32) -> (i32, i32, i32) {
    %c0_i32 = arith.constant 0 : i32
    %c0_i32_0 = arith.constant 0 : i32
    return %arg0, %arg1, %c0_i32 : i32, i32, i32
  }
}

</mosaic_0001>

<llo_original>
// kernel: tpu_custom_call.1
$region0: #{tpu_custom_call.1}
  #allocation0 [shape = 'u32[]', space=smem, size = 0x4, offset = 0x4, fixed_abs, tag = 'smem constant byte address 0x4 - core index']
  #allocation1 [shape = 'u32[144,128]{1,0:T(1,128)}', space=vmem, size = 0x12000, scoped, tag = 'internal scratch']
  %s0 = inlined_call_operand.vmem [shape: bf16[2,32,8], index: 0, kind: input, shape index: {}]
  %s1 = inlined_call_operand.vmem [shape: f32[2,8,32], index: 1, kind: input, shape index: {}]
  %s2 = inlined_call_operand.hbm [shape: bf16[32,32], index: 2, kind: input, shape index: {}]
  %s3 = inlined_call_operand.vmem [shape: f32[1,32], index: 3, kind: input, shape index: {}]
  %s4 = inlined_call_operand.vmem [shape: f32[32,64], index: 4, kind: input, shape index: {}]
  %s5 = inlined_call_operand.hbm [shape: f32[2,8,32], index: 5, kind: output, shape index: {0}]
  %s6 = inlined_call_operand.hbm [shape: f32[2,8,64], index: 6, kind: output, shape index: {1}]
  %7 = xla_tuple %s5, %s6
  %s8 = sld [smem:[#allocation0]]
  $region65: #{tpu_custom_call.1} parent=0
    _
  %s10 = ssub.s32 1, %s8
  %s11 = scalar_select 0, %s10, %s8
  $region1: #{tpu_custom_call.1} parent=0
    #allocation2 [shape = 'u8[8192]{0}', space=vmem, size = 0x2000, scoped, tag = 'input window, operand 2, single buffered']
    #allocation3 [shape = 's32[2]{0}', space=sflag, size = 0x8, scoped, tag = 'scoped memory for tpu_custom_call.1']
    #allocation4 [shape = 's32[2]{0}', space=sflag, size = 0x8, scoped, tag = 'scoped memory for tpu_custom_call.1']
    #allocation5 [shape = 'u8[8192]{0}', space=vmem, size = 0x2000, scoped, tag = 'output window, operand 0']
    #allocation6 [shape = 'u8[8192]{0}', space=vmem, size = 0x2000, scoped, tag = 'output window, operand 1']
    #allocation7 [shape = 's32[2]{0}', space=sflag, size = 0x8, scoped, tag = 'scoped memory for tpu_custom_call.1']
    %12 = vsyncpa [#allocation3], 0
    %13 = vsyncpa [#allocation4], 0
    %s14 = scalar_lea.sflag [#allocation4], 1
    %15 = vsyncpa %s14, 0
    %16 = vsyncpa [#allocation7], 0
    %s17 = scalar_lea.sflag [#allocation7], 1
    %18 = vsyncpa %s17, 0
    loop: start=0, step=1, limit=4
    $region2: #{tpu_custom_call.1} parent=1 // loop_pre_header
      _
    $region3: #{tpu_custom_call.1} parent=1 // loop_header
      %s20 = sphi 0, %s24
      %p21 = scmp.ge.s32.totalorder %s20, 4
      %s27 = sphi 0, %s39
      %s28 = sphi 0, %s35
      %s29 = sphi 0, %s27
      %s30 = sphi 0, %s28
      %s31 = sphi 0, %s29
      %s32 = sphi 0, %s30
      %s44 = sphi 0, %s46
      %s47 = sphi 0, %s44
      %s48 = sphi 0, %s47
      %s64 = sphi 0, %s48
      %s72 = sphi 0, %s74
      %s75 = sphi 0, %s72
      %s76 = sphi 0, %s75
      %s92 = sphi 0, %s76
      %s96 = sphi 0, %s96
      %s98 = sphi 0, %s96
      %s99 = sphi 0, %s98
      %s113 = sphi 0, %s99
      %s117 = sphi 0, %s117
      %s119 = sphi 0, %s117
      %s120 = sphi 0, %s119
      %s134 = sphi 0, %s120
      %s138 = sphi 0, %s138
      %s140 = sphi 0, %s138
      %s141 = sphi 0, %s140
      %s155 = sphi 0, %s141
      %s163 = sphi 0, %s165
      %s166 = sphi 0, %s163
      %s167 = sphi 0, %s166
      %s183 = sphi 0, %s167
      %s191 = sphi 0, %s193
      %s194 = sphi 0, %s191
      %s195 = sphi 0, %s194
      %s211 = sphi 0, %s195
    $region4: #{tpu_custom_call.1} parent=1 // loop_header_branch
      %23 = sbr.rel (%p21) target = $region8
    $region5: #{tpu_custom_call.1} parent=1 // loop_body
      %s25 = ssub.s32 %s20, 1
      %s26 = ssub.s32 %s20, 2
      %s33 = sadd.s32 1, %s28
      %p34 = scmp.ge.s32.totalorder %s33, 1
      %s35 = scalar_select %p34, 0, %s33
      %s36 = sadd.s32 1, %s27
      %s37 = scalar_select %p34, %s36, %s27
      %p38 = scmp.ge.s32.totalorder %s37, 2
      %s39 = scalar_select %p38, 0, %s37
      %s40 = ssub.s32 %s27, %s39
      %s41 = ssub.s32 %s28, %s35
      %s42 = sor.u32 %s40, %s41
      %p43 = scmp.eq.s32.totalorder %s42, 0
      %s45 = sadd.s32 %s44, 1
      %s46 = scalar_select %p43, %s44, %s45
      %p49 = pneg %p43
      %p50 = scmp.eq.s32.totalorder %s20, 1
      %p51 = por %p49, %p50
      %p52 = scmp.ne.s32.totalorder %s44, %s47
      %p53 = scmp.eq.s32.totalorder %s20, 0
      %p54 = por %p52, %p53
      %p55 = scmp.ne.s32.totalorder %s44, %s47
      %p56 = scmp.eq.s32.totalorder %s25, 1
      %p57 = por %p55, %p56
      %p58 = scmp.ne.s32.totalorder %s47, %s48
      %p59 = scmp.eq.s32.totalorder %s25, 0
      %p60 = por %p58, %p59
      %p61 = scmp.ne.s32.totalorder %s47, %s48
      %p62 = scmp.eq.s32.totalorder %s26, 1
      %p63 = por %p61, %p62
      %p65 = scmp.ne.s32.totalorder %s48, %s64
      %p66 = scmp.eq.s32.totalorder %s26, 0
      %p67 = por %p65, %p66
      %s68 = ssub.s32 %s27, %s39
      %s69 = ssub.s32 %s28, %s35
      %s70 = sor.u32 %s68, %s69
      %p71 = scmp.eq.s32.totalorder %s70, 0
      %s73 = sadd.s32 %s72, 1
      %s74 = scalar_select %p71, %s72, %s73
      %p77 = pneg %p71
      %p78 = scmp.eq.s32.totalorder %s20, 1
      %p79 = por %p77, %p78
      %p80 = scmp.ne.s32.totalorder %s72, %s75
      %p81 = scmp.eq.s32.totalorder %s20, 0
      %p82 = por %p80, %p81
      %p83 = scmp.ne.s32.totalorder %s72, %s75
      %p84 = scmp.eq.s32.totalorder %s25, 1
      %p85 = por %p83, %p84
      %p86 = scmp.ne.s32.totalorder %s75, %s76
      %p87 = scmp.eq.s32.totalorder %s25, 0
      %p88 = por %p86, %p87
      %p89 = scmp.ne.s32.totalorder %s75, %s76
      %p90 = scmp.eq.s32.totalorder %s26, 1
      %p91 = por %p89, %p90
      %p93 = scmp.ne.s32.totalorder %s76, %s92
      %p94 = scmp.eq.s32.totalorder %s26, 0
      %p95 = por %p93, %p94
      %s97 = sadd.s32 %s96, 1
      %p100 = scmp.eq.s32.totalorder %s20, 1
      %p101 = scmp.ne.s32.totalorder %s96, %s98
      %p102 = scmp.eq.s32.totalorder %s20, 0
      %p103 = por %p101, %p102
      %p104 = scmp.ne.s32.totalorder %s96, %s98
      %p105 = scmp.eq.s32.totalorder %s25, 1
      %p106 = por %p104, %p105
      %p107 = scmp.ne.s32.totalorder %s98, %s99
      %p108 = scmp.eq.s32.totalorder %s25, 0
      %p109 = por %p107, %p108
      %p110 = scmp.ne.s32.totalorder %s98, %s99
      %p111 = scmp.eq.s32.totalorder %s26, 1
      %p112 = por %p110, %p111
      %p114 = scmp.ne.s32.totalorder %s99, %s113
      %p115 = scmp.eq.s32.totalorder %s26, 0
      %p116 = por %p114, %p115
      %s118 = sadd.s32 %s117, 1
      %p121 = scmp.eq.s32.totalorder %s20, 1
      %p122 = scmp.ne.s32.totalorder %s117, %s119
      %p123 = scmp.eq.s32.totalorder %s20, 0
      %p124 = por %p122, %p123
      %p125 = scmp.ne.s32.totalorder %s117, %s119
      %p126 = scmp.eq.s32.totalorder %s25, 1
      %p127 = por %p125, %p126
      %p128 = scmp.ne.s32.totalorder %s119, %s120
      %p129 = scmp.eq.s32.totalorder %s25, 0
      %p130 = por %p128, %p129
      %p131 = scmp.ne.s32.totalorder %s119, %s120
      %p132 = scmp.eq.s32.totalorder %s26, 1
      %p133 = por %p131, %p132
      %p135 = scmp.ne.s32.totalorder %s120, %s134
      %p136 = scmp.eq.s32.totalorder %s26, 0
      %p137 = por %p135, %p136
      %s139 = sadd.s32 %s138, 1
      %p142 = scmp.eq.s32.totalorder %s20, 1
      %p143 = scmp.ne.s32.totalorder %s138, %s140
      %p144 = scmp.eq.s32.totalorder %s20, 0
      %p145 = por %p143, %p144
      %p146 = scmp.ne.s32.totalorder %s138, %s140
      %p147 = scmp.eq.s32.totalorder %s25, 1
      %p148 = por %p146, %p147
      %p149 = scmp.ne.s32.totalorder %s140, %s141
      %p150 = scmp.eq.s32.totalorder %s25, 0
      %p151 = por %p149, %p150
      %p152 = scmp.ne.s32.totalorder %s140, %s141
      %p153 = scmp.eq.s32.totalorder %s26, 1
      %p154 = por %p152, %p153
      %p156 = scmp.ne.s32.totalorder %s141, %s155
      %p157 = scmp.eq.s32.totalorder %s26, 0
      %p158 = por %p156, %p157
      %s159 = ssub.s32 %s27, %s39
      %s160 = ssub.s32 %s28, %s35
      %s161 = sor.u32 %s159, %s160
      %p162 = scmp.eq.s32.totalorder %s161, 0
      %s164 = sadd.s32 %s163, 1
      %s165 = scalar_select %p162, %s163, %s164
      %p168 = pneg %p162
      %p169 = scmp.eq.s32.totalorder %s20, 1
      %p170 = por %p168, %p169
      %p171 = scmp.ne.s32.totalorder %s163, %s166
      %p172 = scmp.eq.s32.totalorder %s20, 0
      %p173 = por %p171, %p172
      %p174 = scmp.ne.s32.totalorder %s163, %s166
      %p175 = scmp.eq.s32.totalorder %s25, 1
      %p176 = por %p174, %p175
      %p177 = scmp.ne.s32.totalorder %s166, %s167
      %p178 = scmp.eq.s32.totalorder %s25, 0
      %p179 = por %p177, %p178
      %p180 = scmp.ne.s32.totalorder %s166, %s167
      %p181 = scmp.eq.s32.totalorder %s26, 1
      %p182 = por %p180, %p181
      %p184 = scmp.ne.s32.totalorder %s167, %s183
      %p185 = scmp.eq.s32.totalorder %s26, 0
      %p186 = por %p184, %p185
      %s187 = ssub.s32 %s27, %s39
      %s188 = ssub.s32 %s28, %s35
      %s189 = sor.u32 %s187, %s188
      %p190 = scmp.eq.s32.totalorder %s189, 0
      %s192 = sadd.s32 %s191, 1
      %s193 = scalar_select %p190, %s191, %s192
      %p196 = pneg %p190
      %p197 = scmp.eq.s32.totalorder %s20, 1
      %p198 = por %p196, %p197
      %p199 = scmp.ne.s32.totalorder %s191, %s194
      %p200 = scmp.eq.s32.totalorder %s20, 0
      %p201 = por %p199, %p200
      %p202 = scmp.ne.s32.totalorder %s191, %s194
      %p203 = scmp.eq.s32.totalorder %s25, 1
      %p204 = por %p202, %p203
      %p205 = scmp.ne.s32.totalorder %s194, %s195
      %p206 = scmp.eq.s32.totalorder %s25, 0
      %p207 = por %p205, %p206
      %p208 = scmp.ne.s32.totalorder %s194, %s195
      %p209 = scmp.eq.s32.totalorder %s26, 1
      %p210 = por %p208, %p209
      %p212 = scmp.ne.s32.totalorder %s195, %s211
      %p213 = scmp.eq.s32.totalorder %s26, 0
      %p214 = por %p212, %p213
      %p215 = scmp.le.s32.totalorder 1, %s20
      %p216 = scmp.lt.s32.totalorder %s20, 3
      %p217 = pnand %p215, %p216
      %p218 = pneg %p217
      // Predicated region
      $region9: #{tpu_custom_call.1} parent=5 // pred_check
        _
      $region10: #{tpu_custom_call.1} parent=5 // pred_check_branch
        %220 = sbr.rel (%p217) target = $region12
      $region11: #{tpu_custom_call.1} parent=5 // pred_region
        %s221 = ssub.s32 %s20, 1
        // Predicated region
        $region13: #{tpu_custom_call.1} parent=11 // pred_check
          %p222 = pneg %p109
        $region14: #{tpu_custom_call.1} parent=11 // pred_check_branch
          %224 = sbr.rel (%p222) target = $region16
        $region15: #{tpu_custom_call.1} parent=11 // pred_region
          %s226 = ssub.s32 256, 256
          %227 = vsyncadd [#allocation3], %s226
          %s228 = sshll.u32 [#allocation2], 4
          %s229 = int_to_ptr.vmem [resolvable:$true] %s228
          %234 = dma.hbm_to_vmem [thread:$0]  %s2, 256, %s229, [#allocation3], 64, 64, 4
        $region16: #{tpu_custom_call.1} parent=11 // pred_fallthru
          _
        // Predicated region
        $region17: #{tpu_custom_call.1} parent=11 // pred_check
          %p235 = pneg %p130
        $region18: #{tpu_custom_call.1} parent=11 // pred_check_branch
          %237 = sbr.rel (%p235) target = $region20
        $region19: #{tpu_custom_call.1} parent=11 // pred_region
          _
        $region20: #{tpu_custom_call.1} parent=11 // pred_fallthru
          _
        // Predicated region
        $region21: #{tpu_custom_call.1} parent=11 // pred_check
          %p238 = pneg %p151
        $region22: #{tpu_custom_call.1} parent=11 // pred_check_branch
          %240 = sbr.rel (%p238) target = $region24
        $region23: #{tpu_custom_call.1} parent=11 // pred_region
          _
        $region24: #{tpu_custom_call.1} parent=11 // pred_fallthru
          _
      $region12: #{tpu_custom_call.1} parent=5 // pred_fallthru
        _
      %p241 = scmp.lt.s32.totalorder %s20, 2
      // Predicated region
      $region25: #{tpu_custom_call.1} parent=5 // pred_check
        %p242 = pneg %p241
      $region26: #{tpu_custom_call.1} parent=5 // pred_check_branch
        %244 = sbr.rel (%p242) target = $region28
      $region27: #{tpu_custom_call.1} parent=5 // pred_region
        // Predicated region
        $region29: #{tpu_custom_call.1} parent=27 // pred_check
          %p245 = pneg %p54
        $region30: #{tpu_custom_call.1} parent=27 // pred_check_branch
          %247 = sbr.rel (%p245) target = $region32
        $region31: #{tpu_custom_call.1} parent=27 // pred_region
          %p248 = scmp.lt.s32.totalorder %s27, 1
          %s249 = scalar_select %p248, %s27, 1
          %p250 = scmp.lt.s32.totalorder %s28, 0
          %s251 = scalar_select %p250, %s28, 0
          %s252 = smul.addr %s249, 4
          %s253 = sadd.s32 %s251, %s252
          %s254 = smul.addr %s253, 4
          %s255 = scalar_lea.vmem %s0, %s254
        $region32: #{tpu_custom_call.1} parent=27 // pred_fallthru
          _
        // Predicated region
        $region33: #{tpu_custom_call.1} parent=27 // pred_check
          %p256 = pneg %p82
        $region34: #{tpu_custom_call.1} parent=27 // pred_check_branch
          %258 = sbr.rel (%p256) target = $region36
        $region35: #{tpu_custom_call.1} parent=27 // pred_region
          %p259 = scmp.lt.s32.totalorder %s27, 1
          %s260 = scalar_select %p259, %s27, 1
          %p261 = scmp.lt.s32.totalorder %s28, 0
          %s262 = scalar_select %p261, %s28, 0
          %s263 = sadd.s32 %s262, %s260
          %s264 = smul.addr %s263, 8
          %s265 = scalar_lea.vmem %s1, %s264
        $region36: #{tpu_custom_call.1} parent=27 // pred_fallthru
          _
      $region28: #{tpu_custom_call.1} parent=5 // pred_fallthru
        _
      %p266 = scmp.le.s32.totalorder 1, %s20
      %p267 = scmp.lt.s32.totalorder %s20, 3
      %p268 = pnand %p266, %p267
      %p269 = pneg %p268
      // Predicated region
      $region37: #{tpu_custom_call.1} parent=5 // pred_check
        _
      $region38: #{tpu_custom_call.1} parent=5 // pred_check_branch
        %271 = sbr.rel (%p268) target = $region40
      $region39: #{tpu_custom_call.1} parent=5 // pred_region
        %s272 = ssub.s32 %s20, 1
        // Predicated region
        $region41: #{tpu_custom_call.1} parent=39 // pred_check
          %p273 = pneg %p109
        $region42: #{tpu_custom_call.1} parent=39 // pred_check_branch
          %275 = sbr.rel (%p273) target = $region44
        $region43: #{tpu_custom_call.1} parent=39 // pred_region
          %276 = dma.done [#allocation3], 256
        $region44: #{tpu_custom_call.1} parent=39 // pred_fallthru
          _
        %p277 = scmp.lt.s32.totalorder %s29, 1
        %s278 = scalar_select %p277, %s29, 1
        %p279 = scmp.lt.s32.totalorder %s30, 0
        %s280 = scalar_select %p279, %s30, 0
        %s281 = smul.addr %s278, 4
        %s282 = sadd.s32 %s280, %s281
        %s283 = smul.addr %s282, 4
        %s284 = scalar_lea.vmem %s0, %s283
        %p285 = pneg %p60
        %p286 = pneg %p57
        %p287 = scmp.lt.s32.totalorder %s29, 1
        %s288 = scalar_select %p287, %s29, 1
        %p289 = scmp.lt.s32.totalorder %s30, 0
        %s290 = scalar_select %p289, %s30, 0
        %s291 = sadd.s32 %s290, %s288
        %s292 = smul.addr %s291, 8
        %s293 = scalar_lea.vmem %s1, %s292
        %p294 = pneg %p88
        %p295 = pneg %p85
        %p296 = pneg %p109
        %p297 = pneg %p106
        %p298 = pneg %p130
        %p299 = pneg %p127
        %p300 = pneg %p151
        %p301 = pneg %p148
        %p302 = pneg %p179
        %p303 = pneg %p176
        %s304 = sand.u32 %s166, 1
        %s305 = scalar_lea.sflag [#allocation4], %s304
        %s306 = sand.u32 %s166, 1
        %s307 = smul.addr %s306, 8
        %s308 = scalar_lea.vmem [#allocation5], %s307
        %p309 = pneg %p207
        %p310 = pneg %p204
        %s311 = sand.u32 %s194, 1
        %s312 = scalar_lea.sflag [#allocation7], %s311
        %s313 = sand.u32 %s194, 1
        %s314 = smul.addr %s313, 8
        %s315 = scalar_lea.vmem [#allocation6], %s314
        %p316 = scmp.lt.s32.totalorder %s29, 1
        %s317 = scalar_select %p316, %s29, 1
        %p318 = scmp.lt.s32.totalorder %s30, 0
        %s319 = scalar_select %p318, %s30, 0
        %s320 = smul.addr %s317, 4
        %s321 = sadd.s32 %s319, %s320
        %s322 = smul.addr %s321, 4
        %s323 = scalar_lea.vmem %s0, %s322
        %p324 = scmp.lt.s32.totalorder %s29, 1
        %s325 = scalar_select %p324, %s29, 1
        %p326 = scmp.lt.s32.totalorder %s30, 0
        %s327 = scalar_select %p326, %s30, 0
        %s328 = sadd.s32 %s327, %s325
        %s329 = smul.addr %s328, 8
        %s330 = scalar_lea.vmem %s1, %s329
        %v332 = vld [vmem:[%s323] sm:$0xf]
        %v333 = vld [vmem:[%s323 + $0x4] sm:$0xf]
        %v334 = vld [vmem:[%s323 + $0x8] sm:$0xf]
        %v335 = vld [vmem:[%s323 + $0xc] sm:$0xf]
        %v336 = vld [vmem:[#allocation2] sm:$0xf]
        %v337 = vld [vmem:[#allocation2 + $0x4] sm:$0xf]
        %v338 = vld [vmem:[#allocation2 + $0x8] sm:$0xf]
        %v339 = vld [vmem:[#allocation2 + $0xc] sm:$0xf]
        %v340 = vld [vmem:[%s3] sm:$0x1]
        %v342 = vlaneseq
        %v343 = vshrl.u32 %v342, 7
        %v344 = vsub.s32 0, %v343
        %v345 = vrot.slane %v340, %v344
        %v351 = vunpack.c.l.b16 %v332
        %v352 = vunpack.c.l.b16 %v333
        %v353 = vunpack.c.l.b16 %v334
        %v354 = vunpack.c.l.b16 %v335
        %v355 = vpack.c.b16 %v352, %v351
        %v356 = vpack.c.b16 %v354, %v353
        %359 = vxpose.xlu0.c.b16.start [1/8] %v355, 128
        %360 = vxpose.xlu0.c.b16.cont [2/8] %v356, 128
        %361 = vxpose.xlu0.c.b16.cont [3/8] 0, 128
        %362 = vxpose.xlu0.c.b16.cont [4/8] 0, 128
        %363 = vxpose.xlu0.c.b16.cont [5/8] 0, 128
        %364 = vxpose.xlu0.c.b16.cont [6/8] 0, 128
        %365 = vxpose.xlu0.c.b16.cont [7/8] 0, 128
        %366 = vxpose.xlu0.c.b16.end [8/8] 0, 128
        %v367 = vpop.trf.xlu0
        %v368 = vpop.trf.xlu0
        %v369 = vpop.trf.xlu0
        %v370 = vpop.trf.xlu0
        %v371 = vpop.trf.xlu0
        %v372 = vpop.trf.xlu0
        %v373 = vpop.trf.xlu0
        %v374 = vpop.trf.xlu0
        %v379 = vunpack.c.l.b16 %v336
        %v380 = vunpack.c.l.b16 %v337
        %v381 = vunpack.c.l.b16 %v338
        %v382 = vunpack.c.l.b16 %v339
        %v383 = vpack.c.b16 %v380, %v379
        %v384 = vpack.c.b16 %v382, %v381
        %vm387 = vcmask 261120
        %v389 = vsel %vm387, %v367, 0
        %391 = vmatprep.subr.bf16.mxu0 0
        %392 = vmatpush1.bf16.msra.mxu0 %v383
        %393 = vmatprep.subr.bf16.mxu0 0
        %394 = vmatpush1.bf16.msra.mxu0 %v384
        %395 = vmatprep.subr.bf16.mxu0 0
        %396 = vmatpush1.bf16.msra.mxu0 0
        %397 = vmatprep.subr.bf16.mxu0 0
        %398 = vmatpush1.bf16.msra.mxu0 0
        %399 = vmatprep.subr.bf16.mxu0 0
        %400 = vmatpush1.bf16.msra.mxu0 0
        %401 = vmatprep.subr.bf16.mxu0 0
        %402 = vmatpush1.bf16.msra.mxu0 0
        %403 = vmatprep.subr.bf16.mxu0 0
        %404 = vmatpush1.bf16.msra.mxu0 0
        %405 = vmatprep.subr.bf16.mxu0 0
        %406 = vmatpush1.bf16.msra.mxu0 0
        %407 = vmatprep.subr.bf16.mxu0 0
        %408 = vmatpush1.bf16.msra.mxu0 0
        %409 = vmatprep.subr.bf16.mxu0 0
        %410 = vmatpush1.bf16.msra.mxu0 0
        %411 = vmatprep.subr.bf16.mxu0 0
        %412 = vmatpush1.bf16.msra.mxu0 0
        %413 = vmatprep.subr.bf16.mxu0 0
        %414 = vmatpush1.bf16.msra.mxu0 0
        %415 = vmatprep.subr.bf16.mxu0 0
        %416 = vmatpush1.bf16.msra.mxu0 0
        %417 = vmatprep.subr.bf16.mxu0 0
        %418 = vmatpush1.bf16.msra.mxu0 0
        %419 = vmatprep.subr.bf16.mxu0 0
        %420 = vmatpush1.bf16.msra.mxu0 0
        %421 = vmatprep.subr.bf16.mxu0 0
        %422 = vmatpush1.bf16.msra.mxu0 0
        %423 = vmatprep.mubr.bf16.mxu0 0
        %424 = vmatmul.mubr.bf16.gmra.mrb[0].mxu0 %v389
        %v425 = vpop.f32.mrb[0].mxu0
        %v426 = vadd.f32 %v345, %v425
        %v427 = vpop.f32.mrb[0].mxu0
        %v428 = vpop.f32.mrb[0].mxu0
        %v429 = vpop.f32.mrb[0].mxu0
        %430 = vdwg.mxu0
        %431 = vst.msk [vmem:[%s308] sm:$0xff] %vm387, %v426
        %v432 = vld [vmem:[%s330] sm:$0xff]
        %v433 = vadd.f32 %v426, %v432
        %v434 = vlaneseq
        %v435 = vand.u32 %v434, 127
        %vm436 = vcmask 130048
        %v437 = vsel %vm436, %v433, -inf
        %438 = vmax.xlane.f32.xlu0 %v437
        %v439 = vpop.xlane.xlu0 %438
        %vm440 = vcmp.eq.f32.partialorder %v433, %v439
        %v441 = vsel %vm440, %v435, 16
        %v442 = vsel %vm436, %v441, 2147483647
        %v443 = vand.u32 %v442, 65535
        %v444 = vshra.s32 %v442, 16
        %v445 = vcvt.s32.f32 %v443
        %v446 = vcvt.s32.f32 %v444
        %447 = vmin.xlane.f32.xlu0 %v446
        %v448 = vpop.xlane.xlu0 %447
        %vm449 = vcmp.eq.f32.partialorder %v446, %v448
        %v450 = vsel %vm449, %v445, inf
        %451 = vmin.xlane.f32.xlu0 %v450
        %v452 = vpop.xlane.xlu0 %451
        %v453 = vcvt.f32.s32 %v452
        %v454 = vcvt.f32.s32 %v448
        %v455 = vshll.u32 %v454, 16
        %v456 = vadd.s32 %v455, %v453
        %vm457 = vcmp.eq.s32.totalorder %v435, %v456
        %v458 = vsel %vm457, 1, 0
        %v459 = vcvt.s32.f32 %v458
        %vm460 = vcmask 261248
        %v461 = vsel %vm460, %v433, -inf
        %462 = vmax.xlane.f32.xlu0 %v461
        %v463 = vpop.xlane.xlu0 %462
        %vm464 = vcmp.eq.f32.partialorder %v433, %v463
        %465 = vrot.lane.b32.xlu0 %v435, 16
        %v466 = vpop.permute.xlu0 %465
        %v467 = vsel %vm464, %v466, 16
        %v468 = vsel %vm460, %v467, 2147483647
        %v469 = vand.u32 %v468, 65535
        %v470 = vshra.s32 %v468, 16
        %v471 = vcvt.s32.f32 %v469
        %v472 = vcvt.s32.f32 %v470
        %473 = vmin.xlane.f32.xlu0 %v472
        %v474 = vpop.xlane.xlu0 %473
        %vm475 = vcmp.eq.f32.partialorder %v472, %v474
        %v476 = vsel %vm475, %v471, inf
        %477 = vmin.xlane.f32.xlu0 %v476
        %v478 = vpop.xlane.xlu0 %477
        %v479 = vcvt.f32.s32 %v478
        %v480 = vcvt.f32.s32 %v474
        %v481 = vshll.u32 %v480, 16
        %v482 = vadd.s32 %v481, %v479
        %vm483 = vcmp.eq.s32.totalorder %v435, %v482
        %v484 = vsel %vm483, 1, 0
        %v485 = vcvt.s32.f32 %v484
        %487 = vrot.lane.b32.xlu0 %v485, 16
        %v488 = vpop.permute.xlu0 %487
        %v490 = vsel %vm436, %v459, %v488
        %v491 = vld [vmem:[%s4] sm:$0xff]
        %v492 = vld [vmem:[%s4 + $0x8] sm:$0xff]
        %v493 = vld [vmem:[%s4 + $0x10] sm:$0xff]
        %v494 = vld [vmem:[%s4 + $0x18] sm:$0xff]
        %v496 = vsel %vm387, %v490, 0
        %498 = vmatprep.subr.mxu0 0.0
        %499 = vmatpush1.msra.mxu0 %v491
        %500 = vmatprep.subr.mxu0 0.0
        %501 = vmatpush1.msra.mxu0 %v492
        %502 = vmatprep.subr.mxu0 0.0
        %503 = vmatpush1.msra.mxu0 %v493
        %504 = vmatprep.subr.mxu0 0.0
        %505 = vmatpush1.msra.mxu0 %v494
        %506 = vmatprep.subr.mxu0 0.0
        %507 = vmatpush1.msra.mxu0 0.0
        %508 = vmatprep.subr.mxu0 0.0
        %509 = vmatpush1.msra.mxu0 0.0
        %510 = vmatprep.subr.mxu0 0.0
        %511 = vmatpush1.msra.mxu0 0.0
        %512 = vmatprep.subr.mxu0 0.0
        %513 = vmatpush1.msra.mxu0 0.0
        %514 = vmatprep.subr.mxu0 0.0
        %515 = vmatpush1.msra.mxu0 0.0
        %516 = vmatprep.subr.mxu0 0.0
        %517 = vmatpush1.msra.mxu0 0.0
        %518 = vmatprep.subr.mxu0 0.0
        %519 = vmatpush1.msra.mxu0 0.0
        %520 = vmatprep.subr.mxu0 0.0
        %521 = vmatpush1.msra.mxu0 0.0
        %522 = vmatprep.subr.mxu0 0.0
        %523 = vmatpush1.msra.mxu0 0.0
        %524 = vmatprep.subr.mxu0 0.0
        %525 = vmatpush1.msra.mxu0 0.0
        %526 = vmatprep.subr.mxu0 0.0
        %527 = vmatpush1.msra.mxu0 0.0
        %528 = vmatprep.subr.mxu0 0.0
        %529 = vmatpush1.msra.mxu0 0.0
        %530 = vmatprep.subr.mxu0 0.0
        %531 = vmatpush1.msra.mxu0 0.0
        %532 = vmatprep.subr.mxu0 0.0
        %533 = vmatpush1.msra.mxu0 0.0
        %534 = vmatprep.subr.mxu0 0.0
        %535 = vmatpush1.msra.mxu0 0.0
        %536 = vmatprep.subr.mxu0 0.0
        %537 = vmatpush1.msra.mxu0 0.0
        %538 = vmatprep.subr.mxu0 0.0
        %539 = vmatpush1.msra.mxu0 0.0
        %540 = vmatprep.subr.mxu0 0.0
        %541 = vmatpush1.msra.mxu0 0.0
        %542 = vmatprep.subr.mxu0 0.0
        %543 = vmatpush1.msra.mxu0 0.0
        %544 = vmatprep.subr.mxu0 0.0
        %545 = vmatpush1.msra.mxu0 0.0
        %546 = vmatprep.subr.mxu0 0.0
        %547 = vmatpush1.msra.mxu0 0.0
        %548 = vmatprep.subr.mxu0 0.0
        %549 = vmatpush1.msra.mxu0 0.0
        %550 = vmatprep.subr.mxu0 0.0
        %551 = vmatpush1.msra.mxu0 0.0
        %552 = vmatprep.subr.mxu0 0.0
        %553 = vmatpush1.msra.mxu0 0.0
        %554 = vmatprep.subr.mxu0 0.0
        %555 = vmatpush1.msra.mxu0 0.0
        %556 = vmatprep.subr.mxu0 0.0
        %557 = vmatpush1.msra.mxu0 0.0
        %558 = vmatprep.subr.mxu0 0.0
        %559 = vmatpush1.msra.mxu0 0.0
        %560 = vmatprep.subr.mxu0 0.0
        %561 = vmatpush1.msra.mxu0 0.0
        %562 = vmatprep.mubr.f32.mxu0 0.0
        %563 = vmatmul.mubr.f32.gmra.mrb[0].mxu0 %v496
        %v564 = vpop.f32.mrb[0].mxu0
        %v565 = vadd.f32 0.0, %v564
        %v566 = vpop.f32.mrb[0].mxu0
        %567 = vdwg.mxu0
        %vm568 = vcmask 523264
        %569 = vst.msk [vmem:[%s315] sm:$0xff] %vm568, %v565
        %s570 = sand.u32 %s166, 1
        %s571 = scalar_lea.sflag [#allocation4], %s570
        %s572 = sand.u32 %s166, 1
        %s573 = smul.addr %s572, 8
        %s574 = scalar_lea.vmem [#allocation5], %s573
        %s575 = sand.u32 %s194, 1
        %s576 = scalar_lea.sflag [#allocation7], %s575
        %s577 = sand.u32 %s194, 1
        %s578 = smul.addr %s577, 8
        %s579 = scalar_lea.vmem [#allocation6], %s578
        // Predicated region
        $region45: #{tpu_custom_call.1} parent=39 // pred_check
          %p580 = pneg %p176
        $region46: #{tpu_custom_call.1} parent=39 // pred_check_branch
          %582 = sbr.rel (%p580) target = $region48
        $region47: #{tpu_custom_call.1} parent=39 // pred_region
          %s584 = ssub.s32 128, 128
          %585 = vsyncadd %s571, %s584
          %s586 = sadd.s32 %s30, %s29
          %s587 = smul.addr %s586, 128
          %s588 = scalar_lea.hbm %s5, %s587
          %s590 = sshll.u32 %s574, 4
          %s591 = int_to_ptr.vmem [resolvable:$true] %s590
          %593 = dma.vmem_to_hbm [thread:$0]  %s591, 128, %s588, %s571
        $region48: #{tpu_custom_call.1} parent=39 // pred_fallthru
          _
        // Predicated region
        $region49: #{tpu_custom_call.1} parent=39 // pred_check
          %p594 = pneg %p204
        $region50: #{tpu_custom_call.1} parent=39 // pred_check_branch
          %596 = sbr.rel (%p594) target = $region52
        $region51: #{tpu_custom_call.1} parent=39 // pred_region
          %s598 = ssub.s32 128, 128
          %599 = vsyncadd %s576, %s598
          %s600 = sadd.s32 %s30, %s29
          %s601 = smul.addr %s600, 128
          %s602 = scalar_lea.hbm %s6, %s601
          %s604 = sshll.u32 %s579, 4
          %s605 = int_to_ptr.vmem [resolvable:$true] %s604
          %607 = dma.vmem_to_hbm [thread:$0]  %s605, 128, %s602, %s576
        $region52: #{tpu_custom_call.1} parent=39 // pred_fallthru
          _
      $region40: #{tpu_custom_call.1} parent=5 // pred_fallthru
        _
      %p608 = scmp.le.s32.totalorder 2, %s20
      // Predicated region
      $region53: #{tpu_custom_call.1} parent=5 // pred_check
        %p609 = pneg %p608
      $region54: #{tpu_custom_call.1} parent=5 // pred_check_branch
        %611 = sbr.rel (%p609) target = $region56
      $region55: #{tpu_custom_call.1} parent=5 // pred_region
        %s612 = ssub.s32 %s20, 2
        // Predicated region
        $region57: #{tpu_custom_call.1} parent=55 // pred_check
          %p613 = pneg %p182
        $region58: #{tpu_custom_call.1} parent=55 // pred_check_branch
          %615 = sbr.rel (%p613) target = $region60
        $region59: #{tpu_custom_call.1} parent=55 // pred_region
          %s616 = sand.u32 %s167, 1
          %s617 = scalar_lea.sflag [#allocation4], %s616
          %s618 = sand.u32 %s167, 1
          %s619 = smul.addr %s618, 8
          %s620 = scalar_lea.vmem [#allocation5], %s619
          %621 = dma.done %s617, 128
        $region60: #{tpu_custom_call.1} parent=55 // pred_fallthru
          _
        // Predicated region
        $region61: #{tpu_custom_call.1} parent=55 // pred_check
          %p622 = pneg %p210
        $region62: #{tpu_custom_call.1} parent=55 // pred_check_branch
          %624 = sbr.rel (%p622) target = $region64
        $region63: #{tpu_custom_call.1} parent=55 // pred_region
          %s625 = sand.u32 %s195, 1
          %s626 = scalar_lea.sflag [#allocation7], %s625
          %s627 = sand.u32 %s195, 1
          %s628 = smul.addr %s627, 8
          %s629 = scalar_lea.vmem [#allocation6], %s628
          %630 = dma.done %s626, 128
        $region64: #{tpu_custom_call.1} parent=55 // pred_fallthru
          _
      $region56: #{tpu_custom_call.1} parent=5 // pred_fallthru
        _
    $region6: #{tpu_custom_call.1} parent=1 // loop_footer
      %s24 = sadd.s32 1, %s20
    $region7: #{tpu_custom_call.1} parent=1 // loop_footer_branch
      %19 = sbr.rel target = $region3
    $region8: #{tpu_custom_call.1} parent=1 // loop_exit
      _
    %631 = vsyncpa [#allocation3], 1
    %s632 = scalar_lea.sflag [#allocation3], 1
    %633 = vsyncpa %s632, 1
    %634 = vsyncpa [#allocation4], 1
    %s635 = scalar_lea.sflag [#allocation4], 1
    %636 = vsyncpa %s635, 1
    %637 = vsyncpa [#allocation7], 1
    %s638 = scalar_lea.sflag [#allocation7], 1
    %639 = vsyncpa %s638, 1

</llo_original>
